<compile_context>
chip_gen: v5e
topology: v5e:2x2
jax: 0.10.0
libtpu: 0.0.40
codegen_flags: <defaults>
</compile_context>

<pallas_src>
import functools

import jax
import jax.numpy as jnp
from jax.experimental import pallas as pl
from jax.experimental.pallas import tpu as pltpu

ALPHA = 0.8          # self.alpha in the PyTorch module
RANK_MARGIN = 0.05   # self.rank_margin in the PyTorch module
N_PTS = 1000         # number of random point pairs (hard-coded in forward())
NUM_CORES = 2        # leading "parallel" grid axis (v7x has 2 TCs; harmless on v5e/v6e)


def _depth_loss_kernel(pred_ref, tgt_ref, rank_ref, out_ref, *,
                       c_l1, c_gx, c_gy, c_rank):
    step = pl.program_id(1)

    @pl.when(step == 0)
    def _init():
        out_ref[...] = jnp.zeros_like(out_ref)

    bc, h, w = pred_ref.shape
    # Single diff tensor; all full-size terms derive from it.  Batch images are
    # stacked along the sublane axis -> 2D rolls exactly as in the validated v2.
    d = (pred_ref[...].astype(jnp.float32)
         - tgt_ref[...].astype(jnp.float32)).reshape(bc * h, w)

    # XLU rolls give circular adjacent-pair |diff|s.  The spurious pairs are exactly
    # column 0 of gx and rows 0, h, 2h, ... of gy (wrap / cross-image rows) and are
    # subtracted below -> identical to the finite-difference L1 sums.
    gx = jnp.abs(d - pltpu.roll(d, 1, axis=1))      # lane-direction pairs
    gy = jnp.abs(d - pltpu.roll(d, 1, axis=0))      # sublane-direction pairs

    # Fused, pre-scaled single pass -> ONE large cross-lane reduction.
    combined = c_l1 * jnp.abs(d) + c_gx * gx + c_gy * gy
    total = jnp.sum(combined, keepdims=True)                      # (1, 1)

    # Wrap corrections reuse the roll outputs (no extra sub/abs passes).
    wrap_x = c_gx * jnp.sum(gx[:, :1], keepdims=True)             # (1, 1)
    gy_wrap_rows = gy.reshape(bc, h, w)[:, 0, :]                  # (bc, w)
    wrap_y = c_gy * jnp.sum(gy_wrap_rows, keepdims=True)          # (1, 1)

    # Ranking term: rank_arg = margin - sign(ta-tb)*(da-db) precomputed in wrapper,
    # pads are negative so relu contributes exactly 0 -> no masking needed.
    bcr, rows, lanes = rank_ref.shape
    r = rank_ref[...].astype(jnp.float32).reshape(bcr * rows, lanes)
    rank = c_rank * jnp.sum(jnp.maximum(r, 0.0), keepdims=True)   # (1, 1)

    out_ref[...] += total - wrap_x - wrap_y + rank


def depth_loss_l3(pred, target, pts_a, pts_b,
                  alpha=ALPHA, rank_margin=RANK_MARGIN, num_cores=NUM_CORES):
    """Pallas implementation of DepthLossL3.forward.

    pred, target : (N, H, W) float (f32 or bf16 — streamed in native dtype)
    pts_a, pts_b : (N, n_pts) int32 indices into the flattened H*W plane
    """
    n, h, w = pred.shape
    n_pts = pts_a.shape[1]

    # --- rank gather glue (small arrays only; images stay in native dtype in HBM) ---
    pf = pred.reshape(n, h * w)
    tf = target.reshape(n, h * w)
    depth_a = jnp.take_along_axis(pf, pts_a, axis=1).astype(jnp.float32)
    depth_b = jnp.take_along_axis(pf, pts_b, axis=1).astype(jnp.float32)
    target_a = jnp.take_along_axis(tf, pts_a, axis=1).astype(jnp.float32)
    target_b = jnp.take_along_axis(tf, pts_b, axis=1).astype(jnp.float32)
    rank_arg = rank_margin - jnp.sign(target_a - target_b) * (depth_a - depth_b)

    # pad lanes to whole vregs; pad value < 0 so relu(pad) == 0 exactly (stays f32).
    lane_pad = (-n_pts) % 128
    if lane_pad:
        rank_arg = jnp.pad(rank_arg, ((0, 0), (0, lane_pad)), constant_values=-1.0)
    rows = (n_pts + lane_pad) // 128

    # --- batch chunking: ~1 MiB of f32 work per block, capped for v7x's 64 MiB VMEM --
    img_f32_bytes = h * w * 4
    per_core = -(-n // num_cores)                                   # ceil(n / cores)
    bc_target = max(1, (1 << 20) // max(img_f32_bytes, 1))
    bc_vmem = max(1, (24 << 20) // max(img_f32_bytes * 8, 1))       # ~8 live f32 copies/elem
    bc = max(1, min(per_core, bc_target, bc_vmem))
    steps_per_core = -(-per_core // bc)
    n_pad = num_cores * steps_per_core * bc

    pad_n = n_pad - n
    if pad_n:
        # zero-padded images contribute exactly 0 to every term; rank pads give relu==0.
        pred = jnp.pad(pred, ((0, pad_n), (0, 0), (0, 0)))
        target = jnp.pad(target, ((0, pad_n), (0, 0), (0, 0)))
        rank_arg = jnp.pad(rank_arg, ((0, pad_n), (0, 0)), constant_values=-1.0)
    rank_arg = rank_arg.reshape(n_pad, rows, 128)

    kernel = functools.partial(
        _depth_loss_kernel,
        c_l1=1.0 / float(n * h * w),
        c_gx=float(alpha) / float(n * h * (w - 1)),
        c_gy=float(alpha) / float(n * (h - 1) * w),
        c_rank=0.3 / float(n * n_pts),
    )

    # --- VMEM budget from actual block sizes (valid on v5e/v6e 128 MiB and v7x 64 MiB)
    in_itemsize = max(jnp.dtype(pred.dtype).itemsize, jnp.dtype(target.dtype).itemsize)
    block_in_bytes = bc * h * w * in_itemsize * 2                   # pred + target blocks
    rank_block_bytes = bc * rows * 128 * 4
    temp_bytes = 4 * bc * h * w * 4                                 # d, gx, gy, combined
    vmem_limit = int(min(40 << 20,
                         max(4 << 20,
                             2 * (block_in_bytes + rank_block_bytes)
                             + temp_bytes + (2 << 20))))

    cost = pl.CostEstimate(
        flops=int(12 * n_pad * h * w + 2 * n_pad * rows * 128),
        transcendentals=0,
        bytes_accessed=int(n_pad * h * w * in_itemsize * 2
                           + n_pad * rows * 128 * 4 + num_cores * 4),
    )

    partials = pl.pallas_call(
        kernel,
        out_shape=jax.ShapeDtypeStruct((num_cores, 1, 1), jnp.float32),
        grid_spec=pltpu.PrefetchScalarGridSpec(
            num_scalar_prefetch=0,
            grid=(num_cores, steps_per_core),
            in_specs=[
                pl.BlockSpec((bc, h, w),
                             lambda c, s: (c * steps_per_core + s, 0, 0)),
                pl.BlockSpec((bc, h, w),
                             lambda c, s: (c * steps_per_core + s, 0, 0)),
                pl.BlockSpec((bc, rows, 128),
                             lambda c, s: (c * steps_per_core + s, 0, 0)),
            ],
            out_specs=pl.BlockSpec((1, 1, 1), lambda c, s: (c, 0, 0)),
        ),
        compiler_params=pltpu.CompilerParams(
            dimension_semantics=("parallel", "arbitrary"),  # per-core partial, seq. accum
            vmem_limit_bytes=vmem_limit,
        ),
        cost_estimate=cost,
    )(pred, target, rank_arg)
    # combine the per-core partial sums
    return jnp.sum(partials)


def depth_loss_l3_ref(pred, target, pts_a, pts_b,
                      alpha=ALPHA, rank_margin=RANK_MARGIN):
    """Pure-JAX reference (mirrors the PyTorch forward exactly)."""
    l1_loss = jnp.mean(jnp.abs(pred - target))
    gx_p = pred[:, :, :-1] - pred[:, :, 1:]
    gy_p = pred[:, :-1, :] - pred[:, 1:, :]
    gx_t = target[:, :, :-1] - target[:, :, 1:]
    gy_t = target[:, :-1, :] - target[:, 1:, :]
    grad_loss = jnp.mean(jnp.abs(gx_p - gx_t)) + jnp.mean(jnp.abs(gy_p - gy_t))
    n, h, w = pred.shape
    pf, tf = pred.reshape(n, -1), target.reshape(n, -1)
    da = jnp.take_along_axis(pf, pts_a, axis=1)
    db = jnp.take_along_axis(pf, pts_b, axis=1)
    ta = jnp.take_along_axis(tf, pts_a, axis=1)
    tb = jnp.take_along_axis(tf, pts_b, axis=1)
    rank_sign = jnp.sign(ta - tb)
    rank_loss = jnp.mean(jax.nn.relu(rank_margin - rank_sign * (da - db)))
    return l1_loss + alpha * grad_loss + 0.3 * rank_loss


if __name__ == "__main__":
    key = jax.random.PRNGKey(0)
    k_pred, k_tgt, k_a, k_b = jax.random.split(key, 4)

    # small, lane-friendly depth maps: batch=2, H=16, W=128
    n, h, w = 2, 16, 128
    pred = jax.random.uniform(k_pred, (n, h, w), dtype=jnp.float32)
    target = jax.random.uniform(k_tgt, (n, h, w), dtype=jnp.float32)

    # torch.randint(0, h*w, (n, 1000)) equivalent, deterministic via PRNGKey(0)
    pts_a = jax.random.randint(k_a, (n, N_PTS), 0, h * w, dtype=jnp.int32)
    pts_b = jax.random.randint(k_b, (n, N_PTS), 0, h * w, dtype=jnp.int32)

    loss = depth_loss_l3(pred, target, pts_a, pts_b)
    loss = jax.block_until_ready(loss)

    loss_ref = depth_loss_l3_ref(pred, target, pts_a, pts_b)
    assert jnp.allclose(loss, loss_ref, rtol=1e-4, atol=1e-5), (loss, loss_ref)

    print("KERNEL_OK")
</pallas_src>

<mosaic_0001>
module attributes {stable_mosaic.version = 11 : i64} {
  func.func @_depth_loss_kernel(%arg0: i32, %arg1: i32, %arg2: memref<1x16x128xf32, #tpu.memory_space<vmem>>, %arg3: memref<1x16x128xf32, #tpu.memory_space<vmem>>, %arg4: memref<1x8x128xf32, #tpu.memory_space<vmem>>, %arg5: memref<1x1x1xf32, #tpu.memory_space<vmem>>) attributes {dimension_semantics = [#tpu.dimension_semantics<parallel>, #tpu.dimension_semantics<arbitrary>], iteration_bounds = array<i64: 2, 1>, scalar_prefetch = 0 : i64, scratch_operands = 0 : i64, tpu.core_type = #tpu.core_type<tc>, window_params = [{transform_indices = @transform_0, window_bounds = array<i64: 1, 16, 128>}, {transform_indices = @transform_1, window_bounds = array<i64: 1, 16, 128>}, {transform_indices = @transform_2, window_bounds = array<i64: 1, 8, 128>}, {transform_indices = @transform_3, window_bounds = array<i64: 1, 1, 1>}]} {
    %c0_i32 = arith.constant 0 : i32
    %0 = arith.cmpi eq, %arg1, %c0_i32 : i32
    %1 = arith.extui %0 : i1 to i32
    %c0_i32_0 = arith.constant 0 : i32
    %2 = arith.cmpi ne, %1, %c0_i32_0 : i32
    scf.if %2 {
      %cst_26 = arith.constant 0.000000e+00 : f32
      %63 = vector.broadcast %cst_26 : f32 to vector<1x1x1xf32>
      %c0_27 = arith.constant 0 : index
      %c0_28 = arith.constant 0 : index
      %c0_29 = arith.constant 0 : index
      %64 = vector.load %arg5[%c0_27, %c0_28, %c0_29] : memref<1x1x1xf32, #tpu.memory_space<vmem>>, vector<1x1x1xf32>
      tpu.vector_store %arg5[%c0_27, %c0_28, %c0_29], %63 {strides = array<i32>} : memref<1x1x1xf32, #tpu.memory_space<vmem>>, vector<1x1x1xf32>,
    } else {
    }
    %c0 = arith.constant 0 : index
    %c0_1 = arith.constant 0 : index
    %c0_2 = arith.constant 0 : index
    %3 = vector.load %arg2[%c0, %c0_1, %c0_2] : memref<1x16x128xf32, #tpu.memory_space<vmem>>, vector<1x16x128xf32>
    %c0_3 = arith.constant 0 : index
    %c0_4 = arith.constant 0 : index
    %c0_5 = arith.constant 0 : index
    %4 = vector.load %arg3[%c0_3, %c0_4, %c0_5] : memref<1x16x128xf32, #tpu.memory_space<vmem>>, vector<1x16x128xf32>
    %5 = arith.subf %3, %4 : vector<1x16x128xf32>
    %6 = vector.shape_cast %5 : vector<1x16x128xf32> to vector<16x128xf32>
    %c1_i32 = arith.constant 1 : i32
    %7 = tpu.dynamic_rotate %6 by %c1_i32 dim 1 : vector<16x128xf32>, i32 -> vector<16x128xf32>
    %8 = arith.subf %6, %7 : vector<16x128xf32>
    %9 = math.absf %8 : vector<16x128xf32>
    %c1_i32_6 = arith.constant 1 : i32
    %10 = tpu.dynamic_rotate %6 by %c1_i32_6 dim 0 : vector<16x128xf32>, i32 -> vector<16x128xf32>
    %11 = arith.subf %6, %10 : vector<16x128xf32>
    %12 = math.absf %11 : vector<16x128xf32>
    %13 = math.absf %6 : vector<16x128xf32>
    %cst = arith.constant 2.44140625E-4 : f32
    %14 = vector.broadcast %cst : f32 to vector<16x128xf32>
    %15 = arith.mulf %14, %13 : vector<16x128xf32>
    %cst_7 = arith.constant 1.96850393E-4 : f32
    %16 = vector.broadcast %cst_7 : f32 to vector<16x128xf32>
    %17 = arith.mulf %16, %9 : vector<16x128xf32>
    %18 = arith.addf %15, %17 : vector<16x128xf32>
    %cst_8 = arith.constant 2.08333338E-4 : f32
    %19 = vector.broadcast %cst_8 : f32 to vector<16x128xf32>
    %20 = arith.mulf %19, %12 : vector<16x128xf32>
    %21 = arith.addf %18, %20 : vector<16x128xf32>
    %22 = vector.shape_cast %21 : vector<16x128xf32> to vector<1x16x128xf32>
    %cst_9 = arith.constant dense<0.000000e+00> : vector<1xf32>
    %23 = vector.multi_reduction <add>, %22, %cst_9 [1, 2] : vector<1x16x128xf32> to vector<1xf32>
    %24 = vector.shape_cast %23 : vector<1xf32> to vector<1x1x1xf32>
    %25 = vector.extract %24[0, 0, 0] : f32 from vector<1x1x1xf32>
    %26 = vector.broadcast %25 : f32 to vector<1x1xf32>
    %27 = vector.extract_strided_slice %9 {offsets = [0, 0], sizes = [16, 1], strides = [1, 1]} : vector<16x128xf32> to vector<16x1xf32>
    %28 = vector.shape_cast %27 : vector<16x1xf32> to vector<1x16x1xf32>
    %cst_10 = arith.constant dense<0.000000e+00> : vector<1xf32>
    %29 = vector.multi_reduction <add>, %28, %cst_10 [1, 2] : vector<1x16x1xf32> to vector<1xf32>
    %30 = vector.shape_cast %29 : vector<1xf32> to vector<1x1x1xf32>
    %31 = vector.extract %30[0, 0, 0] : f32 from vector<1x1x1xf32>
    %32 = vector.broadcast %31 : f32 to vector<1x1xf32>
    %cst_11 = arith.constant 1.96850393E-4 : f32
    %33 = vector.broadcast %cst_11 : f32 to vector<1x1xf32>
    %34 = arith.mulf %33, %32 : vector<1x1xf32>
    %35 = vector.shape_cast %12 : vector<16x128xf32> to vector<1x16x128xf32>
    %36 = vector.extract_strided_slice %35 {offsets = [0, 0, 0], sizes = [1, 1, 128], strides = [1, 1, 1]} : vector<1x16x128xf32> to vector<1x1x128xf32>
    %37 = vector.shape_cast %36 : vector<1x1x128xf32> to vector<1x128xf32>
    %38 = vector.shape_cast %37 : vector<1x128xf32> to vector<1x1x128xf32>
    %cst_12 = arith.constant dense<0.000000e+00> : vector<1xf32>
    %39 = vector.multi_reduction <add>, %38, %cst_12 [1, 2] : vector<1x1x128xf32> to vector<1xf32>
    %40 = vector.shape_cast %39 : vector<1xf32> to vector<1x1x1xf32>
    %41 = vector.extract %40[0, 0, 0] : f32 from vector<1x1x1xf32>
    %42 = vector.broadcast %41 : f32 to vector<1x1xf32>
    %cst_13 = arith.constant 2.08333338E-4 : f32
    %43 = vector.broadcast %cst_13 : f32 to vector<1x1xf32>
    %44 = arith.mulf %43, %42 : vector<1x1xf32>
    %c0_14 = arith.constant 0 : index
    %c0_15 = arith.constant 0 : index
    %c0_16 = arith.constant 0 : index
    %45 = vector.load %arg4[%c0_14, %c0_15, %c0_16] : memref<1x8x128xf32, #tpu.memory_space<vmem>>, vector<1x8x128xf32>
    %46 = vector.shape_cast %45 : vector<1x8x128xf32> to vector<8x128xf32>
    %cst_17 = arith.constant 0.000000e+00 : f32
    %47 = vector.broadcast %cst_17 : f32 to vector<8x128xf32>
    %48 = arith.maximumf %46, %47 : vector<8x128xf32>
    %49 = vector.shape_cast %48 : vector<8x128xf32> to vector<1x8x128xf32>
    %cst_18 = arith.constant dense<0.000000e+00> : vector<1xf32>
    %50 = vector.multi_reduction <add>, %49, %cst_18 [1, 2] : vector<1x8x128xf32> to vector<1xf32>
    %51 = vector.shape_cast %50 : vector<1xf32> to vector<1x1x1xf32>
    %52 = vector.extract %51[0, 0, 0] : f32 from vector<1x1x1xf32>
    %53 = vector.broadcast %52 : f32 to vector<1x1xf32>
    %cst_19 = arith.constant 1.500000e-04 : f32
    %54 = vector.broadcast %cst_19 : f32 to vector<1x1xf32>
    %55 = arith.mulf %54, %53 : vector<1x1xf32>
    %c0_20 = arith.constant 0 : index
    %c0_21 = arith.constant 0 : index
    %c0_22 = arith.constant 0 : index
    %56 = vector.load %arg5[%c0_20, %c0_21, %c0_22] : memref<1x1x1xf32, #tpu.memory_space<vmem>>, vector<1x1x1xf32>
    %57 = arith.subf %26, %34 : vector<1x1xf32>
    %58 = arith.subf %57, %44 : vector<1x1xf32>
    %59 = arith.addf %58, %55 : vector<1x1xf32>
    %60 = vector.shape_cast %59 : vector<1x1xf32> to vector<1x1x1xf32>
    %61 = arith.addf %56, %60 : vector<1x1x1xf32>
    %c0_23 = arith.constant 0 : index
    %c0_24 = arith.constant 0 : index
    %c0_25 = arith.constant 0 : index
    %62 = vector.load %arg5[%c0_23, %c0_24, %c0_25] : memref<1x1x1xf32, #tpu.memory_space<vmem>>, vector<1x1x1xf32>
    tpu.vector_store %arg5[%c0_23, %c0_24, %c0_25], %61 {strides = array<i32>} : memref<1x1x1xf32, #tpu.memory_space<vmem>>, vector<1x1x1xf32>,
    return
  }
  func.func @transform_0(%arg0: i32, %arg1: i32) -> (i32, i32, i32) {
    %c1_i32 = arith.constant 1 : i32
    %0 = arith.muli %arg0, %c1_i32 : i32
    %1 = arith.addi %0, %arg1 : i32
    %c0_i32 = arith.constant 0 : i32
    %c0_i32_0 = arith.constant 0 : i32
    %c0_i32_1 = arith.constant 0 : i32
    return %1, %c0_i32, %c0_i32_0 : i32, i32, i32
  }
  func.func @transform_1(%arg0: i32, %arg1: i32) -> (i32, i32, i32) {
    %c1_i32 = arith.constant 1 : i32
    %0 = arith.muli %arg0, %c1_i32 : i32
    %1 = arith.addi %0, %arg1 : i32
    %c0_i32 = arith.constant 0 : i32
    %c0_i32_0 = arith.constant 0 : i32
    %c0_i32_1 = arith.constant 0 : i32
    return %1, %c0_i32, %c0_i32_0 : i32, i32, i32
  }
  func.func @transform_2(%arg0: i32, %arg1: i32) -> (i32, i32, i32) {
    %c1_i32 = arith.constant 1 : i32
    %0 = arith.muli %arg0, %c1_i32 : i32
    %1 = arith.addi %0, %arg1 : i32
    %c0_i32 = arith.constant 0 : i32
    %c0_i32_0 = arith.constant 0 : i32
    %c0_i32_1 = arith.constant 0 : i32
    return %1, %c0_i32, %c0_i32_0 : i32, i32, i32
  }
  func.func @transform_3(%arg0: i32, %arg1: i32) -> (i32, i32, i32) {
    %c0_i32 = arith.constant 0 : i32
    %c0_i32_0 = arith.constant 0 : i32
    %c0_i32_1 = arith.constant 0 : i32
    return %arg0, %c0_i32, %c0_i32_0 : i32, i32, i32
  }
}

</mosaic_0001>

<llo_original>
// kernel: tpu_custom_call.1
$region0: #{tpu_custom_call.1}
  #allocation0 [shape = 'u32[]', space=smem, size = 0x4, offset = 0x4, fixed_abs, tag = 'smem constant byte address 0x4 - core index']
  #allocation1 [shape = 'u32[72,128]{1,0:T(1,128)}', space=vmem, size = 0x9000, scoped, tag = 'internal scratch']
  %s0 = inlined_call_operand.hbm [shape: f32[2,16,128], index: 0, kind: input, shape index: {}]
  %s1 = inlined_call_operand.hbm [shape: f32[2,16,128], index: 1, kind: input, shape index: {}]
  %s2 = inlined_call_operand.hbm [shape: f32[2,8,128], index: 2, kind: input, shape index: {}]
  %s3 = inlined_call_operand.vmem [shape: f32[2,1,1], index: 3, kind: output, shape index: {}]
  %s4 = sld [smem:[#allocation0]]
  $region61: #{tpu_custom_call.1} parent=0
    _
  %s6 = ssub.s32 1, %s4
  %s7 = scalar_select 0, %s6, %s4
  $region1: #{tpu_custom_call.1} parent=0
    #allocation2 [shape = 'u8[16384]{0}', space=vmem, size = 0x4000, scoped, tag = 'input window, operand 0']
    #allocation3 [shape = 's32[2]{0}', space=sflag, size = 0x8, scoped, tag = 'scoped memory for tpu_custom_call.1']
    #allocation4 [shape = 'u8[16384]{0}', space=vmem, size = 0x4000, scoped, tag = 'input window, operand 1']
    #allocation5 [shape = 's32[2]{0}', space=sflag, size = 0x8, scoped, tag = 'scoped memory for tpu_custom_call.1']
    #allocation6 [shape = 'u8[8192]{0}', space=vmem, size = 0x2000, scoped, tag = 'input window, operand 2']
    %8 = vsyncpa [#allocation3], 0
    %s9 = scalar_lea.sflag [#allocation3], 1
    %10 = vsyncpa %s9, 0
    %11 = vsyncpa [#allocation5], 0
    %s12 = scalar_lea.sflag [#allocation5], 1
    %13 = vsyncpa %s12, 0
    loop: start=0, step=1, limit=4
    $region2: #{tpu_custom_call.1} parent=1 // loop_pre_header
      _
    $region3: #{tpu_custom_call.1} parent=1 // loop_header
      %s15 = sphi 0, %s19
      %p16 = scmp.ge.s32.totalorder %s15, 4
      %s22 = sphi 0, %s34
      %s23 = sphi 0, %s30
      %s24 = sphi 0, %s22
      %s25 = sphi 0, %s23
      %s26 = sphi 0, %s24
      %s27 = sphi 0, %s25
      %s39 = sphi 0, %s41
      %s42 = sphi 0, %s39
      %s43 = sphi 0, %s42
      %s59 = sphi 0, %s43
      %s67 = sphi 0, %s69
      %s70 = sphi 0, %s67
      %s71 = sphi 0, %s70
      %s87 = sphi 0, %s71
      %s95 = sphi 0, %s97
      %s98 = sphi 0, %s95
      %s99 = sphi 0, %s98
      %s115 = sphi 0, %s99
      %s121 = sphi 0, %s123
      %s124 = sphi 0, %s121
      %s125 = sphi 0, %s124
      %s141 = sphi 0, %s125
    $region4: #{tpu_custom_call.1} parent=1 // loop_header_branch
      %18 = sbr.rel (%p16) target = $region8
    $region5: #{tpu_custom_call.1} parent=1 // loop_body
      %s20 = ssub.s32 %s15, 1
      %s21 = ssub.s32 %s15, 2
      %s28 = sadd.s32 1, %s23
      %p29 = scmp.ge.s32.totalorder %s28, 1
      %s30 = scalar_select %p29, 0, %s28
      %s31 = sadd.s32 1, %s22
      %s32 = scalar_select %p29, %s31, %s22
      %p33 = scmp.ge.s32.totalorder %s32, 2
      %s34 = scalar_select %p33, 0, %s32
      %s35 = sadd.s32 %s22, %s23
      %s36 = sadd.s32 %s34, %s30
      %s37 = ssub.s32 %s35, %s36
      %p38 = scmp.eq.s32.totalorder %s37, 0
      %s40 = sadd.s32 %s39, 1
      %s41 = scalar_select %p38, %s39, %s40
      %p44 = pneg %p38
      %p45 = scmp.eq.s32.totalorder %s15, 1
      %p46 = por %p44, %p45
      %p47 = scmp.ne.s32.totalorder %s39, %s42
      %p48 = scmp.eq.s32.totalorder %s15, 0
      %p49 = por %p47, %p48
      %p50 = scmp.ne.s32.totalorder %s39, %s42
      %p51 = scmp.eq.s32.totalorder %s20, 1
      %p52 = por %p50, %p51
      %p53 = scmp.ne.s32.totalorder %s42, %s43
      %p54 = scmp.eq.s32.totalorder %s20, 0
      %p55 = por %p53, %p54
      %p56 = scmp.ne.s32.totalorder %s42, %s43
      %p57 = scmp.eq.s32.totalorder %s21, 1
      %p58 = por %p56, %p57
      %p60 = scmp.ne.s32.totalorder %s43, %s59
      %p61 = scmp.eq.s32.totalorder %s21, 0
      %p62 = por %p60, %p61
      %s63 = sadd.s32 %s22, %s23
      %s64 = sadd.s32 %s34, %s30
      %s65 = ssub.s32 %s63, %s64
      %p66 = scmp.eq.s32.totalorder %s65, 0
      %s68 = sadd.s32 %s67, 1
      %s69 = scalar_select %p66, %s67, %s68
      %p72 = pneg %p66
      %p73 = scmp.eq.s32.totalorder %s15, 1
      %p74 = por %p72, %p73
      %p75 = scmp.ne.s32.totalorder %s67, %s70
      %p76 = scmp.eq.s32.totalorder %s15, 0
      %p77 = por %p75, %p76
      %p78 = scmp.ne.s32.totalorder %s67, %s70
      %p79 = scmp.eq.s32.totalorder %s20, 1
      %p80 = por %p78, %p79
      %p81 = scmp.ne.s32.totalorder %s70, %s71
      %p82 = scmp.eq.s32.totalorder %s20, 0
      %p83 = por %p81, %p82
      %p84 = scmp.ne.s32.totalorder %s70, %s71
      %p85 = scmp.eq.s32.totalorder %s21, 1
      %p86 = por %p84, %p85
      %p88 = scmp.ne.s32.totalorder %s71, %s87
      %p89 = scmp.eq.s32.totalorder %s21, 0
      %p90 = por %p88, %p89
      %s91 = sadd.s32 %s22, %s23
      %s92 = sadd.s32 %s34, %s30
      %s93 = ssub.s32 %s91, %s92
      %p94 = scmp.eq.s32.totalorder %s93, 0
      %s96 = sadd.s32 %s95, 1
      %s97 = scalar_select %p94, %s95, %s96
      %p100 = pneg %p94
      %p101 = scmp.eq.s32.totalorder %s15, 1
      %p102 = por %p100, %p101
      %p103 = scmp.ne.s32.totalorder %s95, %s98
      %p104 = scmp.eq.s32.totalorder %s15, 0
      %p105 = por %p103, %p104
      %p106 = scmp.ne.s32.totalorder %s95, %s98
      %p107 = scmp.eq.s32.totalorder %s20, 1
      %p108 = por %p106, %p107
      %p109 = scmp.ne.s32.totalorder %s98, %s99
      %p110 = scmp.eq.s32.totalorder %s20, 0
      %p111 = por %p109, %p110
      %p112 = scmp.ne.s32.totalorder %s98, %s99
      %p113 = scmp.eq.s32.totalorder %s21, 1
      %p114 = por %p112, %p113
      %p116 = scmp.ne.s32.totalorder %s99, %s115
      %p117 = scmp.eq.s32.totalorder %s21, 0
      %p118 = por %p116, %p117
      %s119 = ssub.s32 %s22, %s34
      %p120 = scmp.eq.s32.totalorder %s119, 0
      %s122 = sadd.s32 %s121, 1
      %s123 = scalar_select %p120, %s121, %s122
      %p126 = pneg %p120
      %p127 = scmp.eq.s32.totalorder %s15, 1
      %p128 = por %p126, %p127
      %p129 = scmp.ne.s32.totalorder %s121, %s124
      %p130 = scmp.eq.s32.totalorder %s15, 0
      %p131 = por %p129, %p130
      %p132 = scmp.ne.s32.totalorder %s121, %s124
      %p133 = scmp.eq.s32.totalorder %s20, 1
      %p134 = por %p132, %p133
      %p135 = scmp.ne.s32.totalorder %s124, %s125
      %p136 = scmp.eq.s32.totalorder %s20, 0
      %p137 = por %p135, %p136
      %p138 = scmp.ne.s32.totalorder %s124, %s125
      %p139 = scmp.eq.s32.totalorder %s21, 1
      %p140 = por %p138, %p139
      %p142 = scmp.ne.s32.totalorder %s125, %s141
      %p143 = scmp.eq.s32.totalorder %s21, 0
      %p144 = por %p142, %p143
      %p145 = scmp.le.s32.totalorder 1, %s15
      %p146 = scmp.lt.s32.totalorder %s15, 3
      %p147 = pnand %p145, %p146
      %p148 = pneg %p147
      // Predicated region
      $region9: #{tpu_custom_call.1} parent=5 // pred_check
        _
      $region10: #{tpu_custom_call.1} parent=5 // pred_check_branch
        %150 = sbr.rel (%p147) target = $region12
      $region11: #{tpu_custom_call.1} parent=5 // pred_region
        %s151 = ssub.s32 %s15, 1
      $region12: #{tpu_custom_call.1} parent=5 // pred_fallthru
        _
      %p152 = scmp.lt.s32.totalorder %s15, 2
      // Predicated region
      $region13: #{tpu_custom_call.1} parent=5 // pred_check
        %p153 = pneg %p152
      $region14: #{tpu_custom_call.1} parent=5 // pred_check_branch
        %155 = sbr.rel (%p153) target = $region16
      $region15: #{tpu_custom_call.1} parent=5 // pred_region
        // Predicated region
        $region17: #{tpu_custom_call.1} parent=15 // pred_check
          %p156 = pneg %p49
        $region18: #{tpu_custom_call.1} parent=15 // pred_check_branch
          %158 = sbr.rel (%p156) target = $region20
        $region19: #{tpu_custom_call.1} parent=15 // pred_region
          %s159 = sand.u32 %s39, 1
          %s160 = scalar_lea.sflag [#allocation3], %s159
          %s161 = sand.u32 %s39, 1
          %s162 = smul.addr %s161, 16
          %s163 = scalar_lea.vmem [#allocation2], %s162
          %s164 = sadd.s32 %s22, %s23
          %166 = vsyncadd %s160, 0
          %s167 = smul.addr %s164, 2
          %s168 = smul.addr %s167, 8
          %s169 = scalar_lea.hbm %s0, %s168
          %s170 = sshll.u32 %s169, 4
          %s171 = int_to_ptr.hbm [resolvable:$true] %s170
          %s172 = sshll.u32 %s163, 4
          %s173 = int_to_ptr.vmem [resolvable:$true] %s172
          %178 = dma.hbm_to_vmem [thread:$0]  %s171, 256, %s173, %s160, 128, 128, 8
        $region20: #{tpu_custom_call.1} parent=15 // pred_fallthru
          _
        // Predicated region
        $region21: #{tpu_custom_call.1} parent=15 // pred_check
          %p179 = pneg %p77
        $region22: #{tpu_custom_call.1} parent=15 // pred_check_branch
          %181 = sbr.rel (%p179) target = $region24
        $region23: #{tpu_custom_call.1} parent=15 // pred_region
          %s182 = sand.u32 %s15, 1
          %s183 = scalar_lea.sflag [#allocation5], %s182
          %s184 = sand.u32 %s67, 1
          %s185 = smul.addr %s184, 16
          %s186 = scalar_lea.vmem [#allocation4], %s185
          %s187 = sadd.s32 %s22, %s23
          %189 = vsyncadd %s183, 0
          %s190 = smul.addr %s187, 2
          %s191 = smul.addr %s190, 8
          %s192 = scalar_lea.hbm %s1, %s191
          %s193 = sshll.u32 %s192, 4
          %s194 = int_to_ptr.hbm [resolvable:$true] %s193
          %s195 = sshll.u32 %s186, 4
          %s196 = int_to_ptr.vmem [resolvable:$true] %s195
          %201 = dma.hbm_to_vmem [thread:$0]  %s194, 256, %s196, %s183, 128, 128, 8
        $region24: #{tpu_custom_call.1} parent=15 // pred_fallthru
          _
        // Predicated region
        $region25: #{tpu_custom_call.1} parent=15 // pred_check
          %p202 = pneg %p105
        $region26: #{tpu_custom_call.1} parent=15 // pred_check_branch
          %204 = sbr.rel (%p202) target = $region28
        $region27: #{tpu_custom_call.1} parent=15 // pred_region
          %s205 = sand.u32 %s15, 1
          %s206 = scalar_lea.sflag [#allocation5], %s205
          %s207 = sand.u32 %s95, 1
          %s208 = smul.addr %s207, 8
          %s209 = scalar_lea.vmem [#allocation6], %s208
          %s210 = sadd.s32 %s22, %s23
          %212 = vsyncadd %s206, 0
          %s213 = smul.addr %s210, 8
          %s214 = scalar_lea.hbm %s2, %s213
          %s216 = sshll.u32 %s214, 4
          %s217 = int_to_ptr.hbm [resolvable:$true] %s216
          %s218 = sshll.u32 %s209, 4
          %s219 = int_to_ptr.vmem [resolvable:$true] %s218
          %221 = dma.hbm_to_vmem [thread:$0]  %s217, 128, %s219, %s206
        $region28: #{tpu_custom_call.1} parent=15 // pred_fallthru
          _
      $region16: #{tpu_custom_call.1} parent=5 // pred_fallthru
        _
      %p222 = scmp.le.s32.totalorder 1, %s15
      %p223 = scmp.lt.s32.totalorder %s15, 3
      %p224 = pnand %p222, %p223
      %p225 = pneg %p224
      // Predicated region
      $region29: #{tpu_custom_call.1} parent=5 // pred_check
        _
      $region30: #{tpu_custom_call.1} parent=5 // pred_check_branch
        %227 = sbr.rel (%p224) target = $region32
      $region31: #{tpu_custom_call.1} parent=5 // pred_region
        %s228 = ssub.s32 %s15, 1
        %s229 = sand.u32 %s42, 1
        %s230 = scalar_lea.sflag [#allocation3], %s229
        %s231 = sand.u32 %s42, 1
        %s232 = smul.addr %s231, 16
        %s233 = scalar_lea.vmem [#allocation2], %s232
        // Predicated region
        $region33: #{tpu_custom_call.1} parent=31 // pred_check
          %p234 = pneg %p55
        $region34: #{tpu_custom_call.1} parent=31 // pred_check_branch
          %236 = sbr.rel (%p234) target = $region36
        $region35: #{tpu_custom_call.1} parent=31 // pred_region
          %238 = dma.done %s230, 256
        $region36: #{tpu_custom_call.1} parent=31 // pred_fallthru
          _
        %s239 = sand.u32 %s20, 1
        %s240 = scalar_lea.sflag [#allocation5], %s239
        %s241 = sand.u32 %s70, 1
        %s242 = smul.addr %s241, 16
        %s243 = scalar_lea.vmem [#allocation4], %s242
        // Predicated region
        $region37: #{tpu_custom_call.1} parent=31 // pred_check
          %p244 = pneg %p83
        $region38: #{tpu_custom_call.1} parent=31 // pred_check_branch
          %246 = sbr.rel (%p244) target = $region40
        $region39: #{tpu_custom_call.1} parent=31 // pred_region
          %248 = dma.done %s240, 256
        $region40: #{tpu_custom_call.1} parent=31 // pred_fallthru
          _
        %s249 = sand.u32 %s20, 1
        %s250 = scalar_lea.sflag [#allocation5], %s249
        %s251 = sand.u32 %s98, 1
        %s252 = smul.addr %s251, 8
        %s253 = scalar_lea.vmem [#allocation6], %s252
        // Predicated region
        $region41: #{tpu_custom_call.1} parent=31 // pred_check
          %p254 = pneg %p111
        $region42: #{tpu_custom_call.1} parent=31 // pred_check_branch
          %256 = sbr.rel (%p254) target = $region44
        $region43: #{tpu_custom_call.1} parent=31 // pred_region
          %258 = dma.done %s250, 128
        $region44: #{tpu_custom_call.1} parent=31 // pred_fallthru
          _
        %s259 = sand.u32 %s42, 1
        %s260 = scalar_lea.sflag [#allocation3], %s259
        %s261 = sand.u32 %s42, 1
        %s262 = smul.addr %s261, 16
        %s263 = scalar_lea.vmem [#allocation2], %s262
        %p264 = pneg %p55
        %p265 = pneg %p52
        %s266 = sand.u32 %s20, 1
        %s267 = scalar_lea.sflag [#allocation5], %s266
        %s268 = sand.u32 %s70, 1
        %s269 = smul.addr %s268, 16
        %s270 = scalar_lea.vmem [#allocation4], %s269
        %p271 = pneg %p83
        %p272 = pneg %p80
        %s273 = sand.u32 %s20, 1
        %s274 = scalar_lea.sflag [#allocation5], %s273
        %s275 = sand.u32 %s98, 1
        %s276 = smul.addr %s275, 8
        %s277 = scalar_lea.vmem [#allocation6], %s276
        %p278 = pneg %p111
        %p279 = pneg %p108
        %p280 = pneg %p137
        %p281 = pneg %p134
        %p282 = scmp.lt.s32.totalorder %s24, 1
        %s283 = scalar_select %p282, %s24, 1
        %s284 = scalar_lea.vmem %s3, %s283
        %s285 = sadd.s32 %s24, %s25
        %s286 = sadd.s32 %s24, %s25
        %s287 = sadd.s32 %s24, %s25
        %p288 = scmp.lt.s32.totalorder %s24, 1
        %s289 = scalar_select %p288, %s24, 1
        %s290 = scalar_lea.vmem %s3, %s289
        %p291 = scmp.eq.s32.totalorder %s25, 0
        // Predicated region
        $region45: #{tpu_custom_call.1} parent=31 // pred_check
          %p292 = pneg %p291
        $region46: #{tpu_custom_call.1} parent=31 // pred_check_branch
          %294 = sbr.rel (%p292) target = $region48
        $region47: #{tpu_custom_call.1} parent=31 // pred_region
          %vm295 = vcmask 0
          %296 = vst.msk [vmem:[%s290] sm:$0x1] %vm295, 0.0
        $region48: #{tpu_custom_call.1} parent=31 // pred_fallthru
          _
        %v297 = vld [vmem:[%s233] sm:$0xff]
        %v298 = vld [vmem:[%s233 + $0x8] sm:$0xff]
        %v299 = vld [vmem:[%s243] sm:$0xff]
        %v300 = vld [vmem:[%s243 + $0x8] sm:$0xff]
        %v301 = vsub.f32 %v297, %v299
        %v302 = vsub.f32 %v298, %v300
        %303 = vrot.lane.b32.xlu0 %v301, 1
        %v304 = vpop.permute.xlu0 %303
        %305 = vrot.lane.b32.xlu0 %v302, 1
        %v306 = vpop.permute.xlu0 %305
        %v307 = vsub.f32 %v301, %v304
        %v308 = vsub.f32 %v302, %v306
        %v309 = vand.u32 2147483647, %v307
        %v310 = vand.u32 2147483647, %v308
        %v311 = vrot.slane %v301, 7
        %v312 = vrot.slane %v302, 7
        %v313 = vlaneseq
        %v314 = vshrl.u32 %v313, 7
        %vm315 = vcmp.lt.s32.totalorder %v314, 1
        %v316 = vsel %vm315, %v311, %v312
        %v317 = vsel %vm315, %v312, %v311
        %v318 = vsub.f32 %v301, %v317
        %v319 = vsub.f32 %v302, %v316
        %v320 = vand.u32 2147483647, %v318
        %v321 = vand.u32 2147483647, %v319
        %v322 = vand.u32 2147483647, %v301
        %v323 = vand.u32 2147483647, %v302
        %v324 = vmul.f32 %v322, 0.00024414063
        %v325 = vmul.f32 %v323, 0.00024414063
        %v326 = vmul.f32 %v309, 0.0001968504
        %v327 = vmul.f32 %v310, 0.0001968504
        %v328 = vadd.f32 %v324, %v326
        %v329 = vadd.f32 %v325, %v327
        %v330 = vmul.f32 %v320, 0.00020833334
        %v331 = vmul.f32 %v321, 0.00020833334
        %v332 = vadd.f32 %v328, %v330
        %v333 = vadd.f32 %v329, %v331
        %v334 = vadd.f32 %v332, %v333
        %335 = vadd.xlane.f32.xlu0 %v334
        %v336 = vpop.xlane.xlu0 %335
        %v337 = vrot.slane %v336, 4
        %v338 = vadd.f32 %v336, %v337
        %v339 = vrot.slane %v338, 2
        %v340 = vadd.f32 %v338, %v339
        %v341 = vrot.slane %v340, 1
        %v342 = vadd.f32 %v340, %v341
        %s343 = vtos %v342
        %v344 = vstv %s343
        %vm345 = vcmask 7168
        %v346 = vsel %vm345, %v309, 0.0
        %v347 = vsel %vm345, %v310, 0.0
        %v348 = vadd.f32 %v346, %v347
        %349 = vadd.xlane.f32.xlu0 %v348
        %v350 = vpop.xlane.xlu0 %349
        %v351 = vrot.slane %v350, 4
        %v352 = vadd.f32 %v350, %v351
        %v353 = vrot.slane %v352, 2
        %v354 = vadd.f32 %v352, %v353
        %v355 = vrot.slane %v354, 1
        %v356 = vadd.f32 %v354, %v355
        %s357 = vtos %v356
        %v358 = vstv %s357
        %v359 = vmul.f32 %v358, 0.0001968504
        %vm360 = vcmask 1040384
        %v361 = vsel %vm360, %v320, 0.0
        %362 = vadd.xlane.f32.xlu0 %v361
        %v363 = vpop.xlane.xlu0 %362
        %v364 = vrot.slane %v363, 4
        %v365 = vadd.f32 %v363, %v364
        %v366 = vrot.slane %v365, 2
        %v367 = vadd.f32 %v365, %v366
        %v368 = vrot.slane %v367, 1
        %v369 = vadd.f32 %v367, %v368
        %s370 = vtos %v369
        %v371 = vstv %s370
        %v372 = vmul.f32 %v371, 0.00020833334
        %v373 = vld [vmem:[%s253] sm:$0xff]
        %v374 = vmax.f32 %v373, 0.0
        %375 = vadd.xlane.f32.xlu0 %v374
        %v376 = vpop.xlane.xlu0 %375
        %v377 = vrot.slane %v376, 4
        %v378 = vadd.f32 %v376, %v377
        %v379 = vrot.slane %v378, 2
        %v380 = vadd.f32 %v378, %v379
        %v381 = vrot.slane %v380, 1
        %v382 = vadd.f32 %v380, %v381
        %s383 = vtos %v382
        %v384 = vstv %s383
        %v385 = vmul.f32 %v384, 0.00015
        %v386 = vld [vmem:[%s290] sm:$0x1]
        %v387 = vsub.f32 %v344, %v359
        %v388 = vsub.f32 %v387, %v372
        %v389 = vadd.f32 %v388, %v385
        %v390 = vadd.f32 %v386, %v389
        %vm391 = vcmask 0
        %392 = vst.msk [vmem:[%s290] sm:$0x1] %vm391, %v390
        %p393 = scmp.lt.s32.totalorder %s24, 1
        %s394 = scalar_select %p393, %s24, 1
        %s395 = scalar_lea.vmem %s3, %s394
        // Predicated region
        $region49: #{tpu_custom_call.1} parent=31 // pred_check
          %p396 = pneg %p134
        $region50: #{tpu_custom_call.1} parent=31 // pred_check_branch
          %398 = sbr.rel (%p396) target = $region52
        $region51: #{tpu_custom_call.1} parent=31 // pred_region
          _
        $region52: #{tpu_custom_call.1} parent=31 // pred_fallthru
          _
      $region32: #{tpu_custom_call.1} parent=5 // pred_fallthru
        _
      %p399 = scmp.le.s32.totalorder 2, %s15
      // Predicated region
      $region53: #{tpu_custom_call.1} parent=5 // pred_check
        %p400 = pneg %p399
      $region54: #{tpu_custom_call.1} parent=5 // pred_check_branch
        %402 = sbr.rel (%p400) target = $region56
      $region55: #{tpu_custom_call.1} parent=5 // pred_region
        %s403 = ssub.s32 %s15, 2
        // Predicated region
        $region57: #{tpu_custom_call.1} parent=55 // pred_check
          %p404 = pneg %p140
        $region58: #{tpu_custom_call.1} parent=55 // pred_check_branch
          %406 = sbr.rel (%p404) target = $region60
        $region59: #{tpu_custom_call.1} parent=55 // pred_region
          %p407 = scmp.lt.s32.totalorder %s26, 1
          %s408 = scalar_select %p407, %s26, 1
          %s409 = scalar_lea.vmem %s3, %s408
        $region60: #{tpu_custom_call.1} parent=55 // pred_fallthru
          _
      $region56: #{tpu_custom_call.1} parent=5 // pred_fallthru
        _
    $region6: #{tpu_custom_call.1} parent=1 // loop_footer
      %s19 = sadd.s32 1, %s15
    $region7: #{tpu_custom_call.1} parent=1 // loop_footer_branch
      %14 = sbr.rel target = $region3
    $region8: #{tpu_custom_call.1} parent=1 // loop_exit
      _
    %410 = vsyncpa [#allocation3], 1
    %s411 = scalar_lea.sflag [#allocation3], 1
    %412 = vsyncpa %s411, 1
    %413 = vsyncpa [#allocation5], 1
    %s414 = scalar_lea.sflag [#allocation5], 1
    %415 = vsyncpa %s414, 1

</llo_original>
